<compile_context>
chip_gen: v7x
topology: tpu7x:2x2x1
jax: 0.10.0
libtpu: 0.0.40
codegen_flags: <defaults>
</compile_context>

<pallas_src>
import functools

import jax
import jax.numpy as jnp
from jax.experimental import pallas as pl
from jax.experimental.pallas import tpu as pltpu

EPS = 1e-5

# <=32 MiB is safe headroom on every generation (v5e/v6e have 128 MiB VMEM, v7x 64 MiB);
# every block used below is at most a few MiB, so no per-generation tuning is needed.
VMEM_LIMIT_BYTES = 32 * 1024 * 1024

# If the whole (B, Cin, S) f32 activation is below this, the post-conv epilogue is
# fused into ONE single-block pallas_call (no grid, no padding).
SINGLE_BLOCK_BYTES = 4 * 1024 * 1024

# Lane-tile targets for the tiled (large-S) fallback path.
TILE_TARGET_BYTES = 2 * 1024 * 1024      # >= 256 KiB blocks ~ 85% of HBM roofline
TILE_MIN_LANES = 512
TILE_MAX_LANES = 8192


# ---------------------------------------------------------------------------
# small helpers
# ---------------------------------------------------------------------------
def _round_up(n, m):
    return ((n + m - 1) // m) * m


def _choose_lane_tile(S, row_bytes):
    """Lane tile (multiple of 128, >=512 when possible) targeting ~2 MiB blocks."""
    St = (TILE_TARGET_BYTES // max(row_bytes, 1) // 128) * 128
    St = max(TILE_MIN_LANES, min(TILE_MAX_LANES, St))
    St = min(St, _round_up(S, 128))
    return max(St, 128)


def _cparams(sem):
    return pltpu.CompilerParams(dimension_semantics=sem,
                                vmem_limit_bytes=VMEM_LIMIT_BYTES)


# ---------------------------------------------------------------------------
# Pallas kernels
# ---------------------------------------------------------------------------
def _fused_gate_norm_prelu_kernel(y_ref, g_ref, b_ref, al_ref, o_ref, *,
                                  norm_type, eps, gated):
    """Single-block fused epilogue: [GLU gating] -> BN/IN (batch stats, centered
    variance) -> folded affine (one FMA) -> per-channel PReLU."""
    if gated:
        C = y_ref.shape[1] // 2
        out = y_ref[:, :C, :].astype(jnp.float32)      # static ref views, no HBM copy
        gate = y_ref[:, C:, :].astype(jnp.float32)
        h = out * (1.0 / (1.0 + jnp.exp(-gate)))       # sigmoid gating (exp on EUP)
    else:
        h = y_ref[...].astype(jnp.float32)
    B, _, S = h.shape
    if norm_type == "BN":                              # per-channel stats over (B, S)
        inv_n = 1.0 / float(B * S)
        mean = jnp.sum(jnp.sum(h, axis=2, keepdims=True), axis=0, keepdims=True) * inv_n
        d = h - mean
        var = jnp.sum(jnp.sum(d * d, axis=2, keepdims=True), axis=0, keepdims=True) * inv_n
    else:                                              # IN: per-(B, C) stats over S
        inv_n = 1.0 / float(S)
        mean = jnp.sum(h, axis=2, keepdims=True) * inv_n
        d = h - mean
        var = jnp.sum(d * d, axis=2, keepdims=True) * inv_n
    a = g_ref[...] * jax.lax.rsqrt(var + eps)          # folded scale
    bb = b_ref[...] - mean * a                         # folded shift
    z = h * a + bb
    o_ref[...] = jnp.where(z >= 0.0, z, al_ref[...] * z).astype(o_ref.dtype)


def _glu_stats_kernel(y_ref, o_ref, s1_ref, s2_ref):
    """Tiled pass 1 (gated): GLU gating + per-(B,C) sum / sum-of-squares accumulation
    (stat outputs stay VMEM-resident across the 'arbitrary' grid axis)."""
    @pl.when(pl.program_id(0) == 0)
    def _init():
        s1_ref[...] = jnp.zeros_like(s1_ref)
        s2_ref[...] = jnp.zeros_like(s2_ref)

    C = o_ref.shape[1]
    out = y_ref[:, :C, :].astype(jnp.float32)
    gate = y_ref[:, C:, :].astype(jnp.float32)
    h = out * (1.0 / (1.0 + jnp.exp(-gate)))
    o_ref[...] = h.astype(o_ref.dtype)
    s1_ref[...] += jnp.sum(h, axis=-1, keepdims=True)
    s2_ref[...] += jnp.sum(h * h, axis=-1, keepdims=True)


def _stats_kernel(x_ref, s1_ref, s2_ref):
    """Tiled pass 1 (non-gated): per-(B,C) sum / sum-of-squares accumulation."""
    @pl.when(pl.program_id(0) == 0)
    def _init():
        s1_ref[...] = jnp.zeros_like(s1_ref)
        s2_ref[...] = jnp.zeros_like(s2_ref)

    x = x_ref[...].astype(jnp.float32)
    s1_ref[...] += jnp.sum(x, axis=-1, keepdims=True)
    s2_ref[...] += jnp.sum(x * x, axis=-1, keepdims=True)


def _affine_prelu_kernel(x_ref, a_ref, b_ref, al_ref, o_ref):
    """Tiled pass 2: folded normalization affine (single FMA) + per-channel PReLU."""
    x = x_ref[...].astype(jnp.float32)
    y = x * a_ref[...] + b_ref[...]                    # (B, C, 1) broadcast
    o_ref[...] = jnp.where(y >= 0.0, y, al_ref[...] * y).astype(o_ref.dtype)


def _cln1d_kernel(x_ref, tri_ref, g_ref, b_ref, o_ref, csum_ref, cpow_ref, *,
                  eps, num_ch):
    """Cumulative LayerNorm 1D, chunked along T with carried running (sum, power-sum).
    The (Tt, Tt) lower-triangular prefix operand is an input with a constant index_map,
    so it is fetched once and stays VMEM-resident (no per-chunk iota/compare)."""
    t_idx = pl.program_id(0)

    @pl.when(t_idx == 0)
    def _init():
        csum_ref[...] = jnp.zeros_like(csum_ref)
        cpow_ref[...] = jnp.zeros_like(cpow_ref)

    x = x_ref[...].astype(jnp.float32)                 # (B, C, Tt)
    _, _, Tt = x.shape
    s = jnp.sum(x, axis=1)                             # (B, Tt)
    p = jnp.sum(x * x, axis=1)                         # (B, Tt)

    # chunk-local inclusive prefix sums via the resident tri operand (shared by both
    # matmuls; with only B rows the MXU is far from saturated so this is cheap).
    tri = tri_ref[...]
    loc_sum = jnp.dot(s, tri, preferred_element_type=jnp.float32)
    loc_pow = jnp.dot(p, tri, preferred_element_type=jnp.float32)

    cum_sum = loc_sum + csum_ref[...]                  # carry: (B, 1) broadcast
    cum_pow = loc_pow + cpow_ref[...]

    # update carry for the next chunk
    csum_ref[...] += jnp.sum(s, axis=-1, keepdims=True)
    cpow_ref[...] += jnp.sum(p, axis=-1, keepdims=True)

    t0 = t_idx * Tt
    tglob = (jax.lax.broadcasted_iota(jnp.int32, (1, Tt), 1) + t0 + 1).astype(jnp.float32)
    cnt = float(num_ch) * tglob                        # (1, Tt)

    cum_mean = cum_sum / cnt
    cum_var = (cum_pow - 2.0 * cum_mean * cum_sum) / cnt + cum_mean * cum_mean
    inv_std = jax.lax.rsqrt(cum_var + eps)             # rsqrt, no big divide

    y = (x - cum_mean[:, None, :]) * inv_std[:, None, :]
    o_ref[...] = (y * g_ref[...] + b_ref[...]).astype(o_ref.dtype)


# ---------------------------------------------------------------------------
# Pallas wrappers
# ---------------------------------------------------------------------------
def _norm_prelu_pallas(y3, norm_type, gamma, beta, alpha, gated, eps=EPS,
                       single_block_limit=SINGLE_BLOCK_BYTES):
    """y3: (B, Cin, S); gated=True means Cin = 2C and GLU gating is fused in.
    Returns PReLU(BN/IN(GLU(y3))) of shape (B, C, S)."""
    B, Cin, S = y3.shape
    C = Cin // 2 if gated else Cin
    g = gamma.reshape(C).astype(jnp.float32)
    b = beta.reshape(C).astype(jnp.float32)
    al = alpha.reshape(C).astype(jnp.float32)

    if B * Cin * S * 4 <= single_block_limit:
        # -- fused single-block path: one pallas_call, one HBM read + one HBM write.
        #    Full-array blocks are exempt from the (8,128) rule -> no pad/slice.
        kern = functools.partial(_fused_gate_norm_prelu_kernel,
                                 norm_type=norm_type, eps=eps, gated=gated)
        return pl.pallas_call(
            kern,
            out_shape=jax.ShapeDtypeStruct((B, C, S), y3.dtype),
            compiler_params=pltpu.CompilerParams(vmem_limit_bytes=VMEM_LIMIT_BYTES),
        )(y3, g.reshape(1, C, 1), b.reshape(1, C, 1), al.reshape(1, C, 1))

    # -- tiled two-pass fallback for large activations --------------------------------
    dtype = y3.dtype
    St = _choose_lane_tile(S, B * Cin * 4)
    Sp = _round_up(S, St)                       # pad once, to the tile multiple
    yp = jnp.pad(y3, ((0, 0), (0, 0), (0, Sp - S))) if Sp != S else y3
    n_chunks = Sp // St
    stat_spec = pl.BlockSpec((B, C, 1), lambda s: (0, 0, 0))

    if gated:
        h_p, s1, s2 = pl.pallas_call(
            _glu_stats_kernel,
            out_shape=(jax.ShapeDtypeStruct((B, C, Sp), dtype),
                       jax.ShapeDtypeStruct((B, C, 1), jnp.float32),
                       jax.ShapeDtypeStruct((B, C, 1), jnp.float32)),
            grid=(n_chunks,),
            in_specs=[pl.BlockSpec((B, Cin, St), lambda s: (0, 0, s))],
            out_specs=(pl.BlockSpec((B, C, St), lambda s: (0, 0, s)),
                       stat_spec, stat_spec),
            compiler_params=_cparams(("arbitrary",)),
        )(yp)
    else:
        h_p = yp
        s1, s2 = pl.pallas_call(
            _stats_kernel,
            out_shape=(jax.ShapeDtypeStruct((B, C, 1), jnp.float32),
                       jax.ShapeDtypeStruct((B, C, 1), jnp.float32)),
            grid=(n_chunks,),
            in_specs=[pl.BlockSpec((B, C, St), lambda s: (0, 0, s))],
            out_specs=(stat_spec, stat_spec),
            compiler_params=_cparams(("arbitrary",)),
        )(yp)

    s1 = s1[..., 0]                              # (B, C)
    s2 = s2[..., 0]
    if norm_type == "BN":                        # per-channel stats over (B, S)
        n = float(B * S)
        mean = jnp.sum(s1, axis=0, keepdims=True) / n
        var = jnp.sum(s2, axis=0, keepdims=True) / n - mean * mean
        mean = jnp.broadcast_to(mean, (B, C))
        var = jnp.broadcast_to(var, (B, C))
    else:                                        # IN: per-(B, C) stats over S
        n = float(S)
        mean = s1 / n
        var = s2 / n - mean * mean
    var = jnp.maximum(var, 0.0)

    a = g[None, :] * jax.lax.rsqrt(var + eps)    # folded scale
    bb = b[None, :] - mean * a                   # folded shift
    alb = jnp.broadcast_to(al[None, :], (B, C))

    par_spec = pl.BlockSpec((B, C, 1), lambda s: (0, 0, 0))
    out_p = pl.pallas_call(
        _affine_prelu_kernel,
        out_shape=jax.ShapeDtypeStruct((B, C, Sp), dtype),
        grid=(n_chunks,),
        in_specs=[pl.BlockSpec((B, C, St), lambda s: (0, 0, s)),
                  par_spec, par_spec, par_spec],
        out_specs=pl.BlockSpec((B, C, St), lambda s: (0, 0, s)),
        compiler_params=_cparams(("parallel",)),
    )(h_p, a.reshape(B, C, 1), bb.reshape(B, C, 1), alb.reshape(B, C, 1))
    return out_p[:, :, :S]


def _cln1d_pallas(x, gamma, beta, eps=EPS):
    """x: (B, C, T), gamma/beta: (C, 1).  Chunked cumulative LayerNorm 1D."""
    B, C, T = x.shape
    Tt = min(256, _round_up(T, 128))             # MXU-friendly chunk on v6e/v7x
    Tp = _round_up(T, Tt)
    xp = jnp.pad(x, ((0, 0), (0, 0), (0, Tp - T))) if Tp != T else x
    tri = jnp.triu(jnp.ones((Tt, Tt), jnp.float32))    # tri[t', t] = (t' <= t)
    y = pl.pallas_call(
        functools.partial(_cln1d_kernel, eps=eps, num_ch=C),
        out_shape=jax.ShapeDtypeStruct((B, C, Tp), x.dtype),
        grid=(Tp // Tt,),
        in_specs=[pl.BlockSpec((B, C, Tt), lambda t: (0, 0, t)),
                  pl.BlockSpec((Tt, Tt), lambda t: (0, 0)),     # resident constant
                  pl.BlockSpec((C, 1), lambda t: (0, 0)),
                  pl.BlockSpec((C, 1), lambda t: (0, 0))],
        out_specs=pl.BlockSpec((B, C, Tt), lambda t: (0, 0, t)),
        scratch_shapes=[pltpu.VMEM((B, 1), jnp.float32),
                        pltpu.VMEM((B, 1), jnp.float32)],
        compiler_params=_cparams(("arbitrary",)),
    )(xp, tri, gamma.astype(jnp.float32), beta.astype(jnp.float32))
    return y[:, :, :T]


# ---------------------------------------------------------------------------
# Module-level glue (NormSwitch API + En_unet_module forward)
# ---------------------------------------------------------------------------
def norm_switch_forward(x, norm_type, dim_size, gamma, beta, eps=EPS):
    """Forward pass of NormSwitch(norm_type, dim_size, c) (normalization only)."""
    assert norm_type in ("BN", "IN", "cLN") and dim_size in ("1D", "2D")
    if norm_type == "cLN":
        if dim_size == "2D":
            # TODO(synk): CumulativeLayerNorm2d has no forward() in the reference.
            raise NotImplementedError("cLN 2D has no forward pass in the reference module")
        # NOTE: the reference buggily passes dim_size (a string) as num_features;
        # implemented here with num_features = C.
        return _cln1d_pallas(x, gamma.reshape(-1, 1), beta.reshape(-1, 1), eps)
    B, C = x.shape[0], x.shape[1]
    x3 = x.reshape(B, C, -1)
    identity_alpha = jnp.ones((C,), jnp.float32)       # PReLU slope 1 == identity
    y3 = _norm_prelu_pallas(x3, norm_type, gamma.reshape(-1), beta.reshape(-1),
                            identity_alpha, gated=False, eps=eps)
    return y3.reshape(x.shape)


def gate_norm_prelu_2d(y4, norm_type, gamma, beta, alpha, use_pallas, gated=True, eps=EPS):
    """[GLU gating (if gated)] -> NormSwitch(norm_type, '2D', C) -> PReLU(C),
    fused into a single Pallas call on the fast path."""
    B, Cin, T, F = y4.shape
    C = Cin // 2 if gated else Cin
    if norm_type == "cLN":
        # TODO(synk): CumulativeLayerNorm2d has no forward() in the reference.
        raise NotImplementedError("cLN 2D has no forward pass in the reference module")
    if use_pallas:
        y3 = _norm_prelu_pallas(y4.reshape(B, Cin, T * F), norm_type,
                                gamma, beta, alpha, gated=gated, eps=eps)
        return y3.reshape(B, C, T, F)
    # pure-JAX reference path
    h = (y4[:, :C] * jax.nn.sigmoid(y4[:, C:])) if gated else y4
    axes = (0, 2, 3) if norm_type == "BN" else (2, 3)
    mean = jnp.mean(h, axis=axes, keepdims=True)
    var = jnp.mean((h - mean) ** 2, axis=axes, keepdims=True)
    z = (h - mean) * jax.lax.rsqrt(var + eps)
    z = z * gamma[None, :, None, None] + beta[None, :, None, None]
    return jnp.where(z >= 0.0, z, alpha[None, :, None, None] * z)


def conv2d(x, w, b, stride):
    """PyTorch Conv2d (NCHW, OIHW weights, VALID padding)."""
    y = jax.lax.conv_general_dilated(x, w, window_strides=stride, padding="VALID",
                                     dimension_numbers=("NCHW", "OIHW", "NCHW"))
    return y + b[None, :, None, None]


def conv_transpose2d(x, w, b, stride):
    """PyTorch ConvTranspose2d (weights (Cin, Cout, kH, kW), padding=0)."""
    kH, kW = w.shape[2], w.shape[3]
    w_t = jnp.transpose(jnp.flip(w, axis=(2, 3)), (1, 0, 2, 3))   # -> (Cout, Cin, kH, kW)
    y = jax.lax.conv_general_dilated(x, w_t, window_strides=(1, 1),
                                     padding=[(kH - 1, kH - 1), (kW - 1, kW - 1)],
                                     lhs_dilation=stride,
                                     dimension_numbers=("NCHW", "OIHW", "NCHW"))
    return y + b[None, :, None, None]


def init_en_unet_params(key, cfg):
    cin, cout = cfg["cin"], cfg["cout"]
    k1, k2 = cfg["k1"], cfg["k2"]
    scale, intra_connect, is_deconv = cfg["scale"], cfg["intra_connect"], cfg["is_deconv"]
    keys = jax.random.split(key, 2 + 4 * scale)
    it = iter(keys)

    def w_init(k, shape):
        return 0.1 * jax.random.normal(k, shape, jnp.float32)

    params = {}
    if not is_deconv:
        params["in_w"] = w_init(next(it), (2 * cout, cin, k1[0], k1[1]))
    else:
        params["in_w"] = w_init(next(it), (cin, 2 * cout, k1[0], k1[1]))
    params["in_b"] = w_init(next(it), (2 * cout,))
    params["in_gamma"] = jnp.ones((cout,), jnp.float32)
    params["in_beta"] = jnp.zeros((cout,), jnp.float32)
    params["in_alpha"] = jnp.full((cout,), 0.25, jnp.float32)

    enco, deco = [], []
    for _ in range(scale):
        enco.append(dict(w=w_init(next(it), (cout, cout, k2[0], k2[1])),
                         b=w_init(next(it), (cout,)),
                         gamma=jnp.ones((cout,), jnp.float32),
                         beta=jnp.zeros((cout,), jnp.float32),
                         alpha=jnp.full((cout,), 0.25, jnp.float32)))
    for i in range(scale):
        c_in = cout if (i == 0 or intra_connect == "add") else 2 * cout
        deco.append(dict(w=w_init(next(it), (c_in, cout, k2[0], k2[1])),
                         b=w_init(next(it), (cout,)),
                         gamma=jnp.ones((cout,), jnp.float32),
                         beta=jnp.zeros((cout,), jnp.float32),
                         alpha=jnp.full((cout,), 0.25, jnp.float32)))
    params["enco"] = enco
    params["deco"] = deco
    return params


def en_unet_forward(x, params, cfg, use_pallas=True):
    """Forward pass of En_unet_module."""
    k1 = cfg["k1"]
    norm_type = cfg["norm_type"]
    intra_connect = cfg["intra_connect"]
    stride = (1, 2)

    # in_conv: GateConv(Transpose)2d -> NormSwitch('2D') -> PReLU (epilogue fused)
    if not cfg["is_deconv"]:
        h = x
        if k1[0] > 1:                                          # causal time pad
            h = jnp.pad(h, ((0, 0), (0, 0), (k1[0] - 1, 0), (0, 0)))
        h = conv2d(h, params["in_w"], params["in_b"], stride)
    else:
        h = conv_transpose2d(x, params["in_w"], params["in_b"], stride)
        if k1[0] > 1:                                          # Chomp_T
            h = h[:, :, : -(k1[0] - 1), :]
    x_resi = gate_norm_prelu_2d(h, norm_type, params["in_gamma"], params["in_beta"],
                                params["in_alpha"], use_pallas, gated=True)

    x_cur = x_resi
    x_list = []
    for ep in params["enco"]:                                  # Conv2dunit
        y = conv2d(x_cur, ep["w"], ep["b"], stride)
        x_cur = gate_norm_prelu_2d(y, norm_type, ep["gamma"], ep["beta"], ep["alpha"],
                                   use_pallas, gated=False)
        x_list.append(x_cur)
    for i, dp in enumerate(params["deco"]):                    # Deconv2dunit
        if i == 0:
            inp = x_cur
        else:
            aux = x_list[-(i + 1)]
            inp = x_cur + aux if intra_connect == "add" else jnp.concatenate([x_cur, aux], axis=1)
        y = conv_transpose2d(inp, dp["w"], dp["b"], stride)
        x_cur = gate_norm_prelu_2d(y, norm_type, dp["gamma"], dp["beta"], dp["alpha"],
                                   use_pallas, gated=False)
    return x_resi + x_cur


# ---------------------------------------------------------------------------
# Pure-JAX references for the standalone kernels
# ---------------------------------------------------------------------------
def _ref_bn1d(x3, g, b, eps=EPS):
    mean = jnp.mean(x3, axis=(0, 2), keepdims=True)
    var = jnp.mean((x3 - mean) ** 2, axis=(0, 2), keepdims=True)
    return (x3 - mean) * jax.lax.rsqrt(var + eps) * g[None, :, None] + b[None, :, None]


def _ref_in1d(x3, g, b, eps=EPS):
    mean = jnp.mean(x3, axis=2, keepdims=True)
    var = jnp.mean((x3 - mean) ** 2, axis=2, keepdims=True)
    return (x3 - mean) * jax.lax.rsqrt(var + eps) * g[None, :, None] + b[None, :, None]


def _ref_cln1d(x3, g, b, eps=EPS):
    B, C, T = x3.shape
    cum_sum = jnp.cumsum(jnp.sum(x3, axis=1), axis=1)
    cum_pow = jnp.cumsum(jnp.sum(x3 * x3, axis=1), axis=1)
    cnt = (C * jnp.arange(1, T + 1, dtype=x3.dtype))[None, :]
    cum_mean = cum_sum / cnt
    cum_var = (cum_pow - 2 * cum_mean * cum_sum) / cnt + cum_mean ** 2
    cum_std = jnp.sqrt(cum_var + eps)
    y = (x3 - cum_mean[:, None, :]) / cum_std[:, None, :]
    return y * g[None, :, None] + b[None, :, None]


def _ref_gated_norm_prelu_3d(y3, norm_type, g, b, al, gated, eps=EPS):
    C = y3.shape[1] // 2 if gated else y3.shape[1]
    h = (y3[:, :C] * jax.nn.sigmoid(y3[:, C:])) if gated else y3
    axes = (0, 2) if norm_type == "BN" else (2,)
    mean = jnp.mean(h, axis=axes, keepdims=True)
    var = jnp.mean((h - mean) ** 2, axis=axes, keepdims=True)
    z = (h - mean) * jax.lax.rsqrt(var + eps) * g[None, :, None] + b[None, :, None]
    return jnp.where(z >= 0.0, z, al[None, :, None] * z)


# ---------------------------------------------------------------------------
if __name__ == "__main__":
    key = jax.random.PRNGKey(0)
    (k_xa, k_xb, k_x1, k_xc, k_pa, k_pb,
     k_g1, k_g2, k_g3, k_g4, k_yt, k_xt) = jax.random.split(key, 12)

    # 1) Full En_unet_module: conv in_conv, BN norm, 'cat' skips (fused single-block path)
    cfg_a = dict(cin=2, cout=4, k1=(2, 5), k2=(1, 3), intra_connect="cat",
                 norm_type="BN", scale=2, is_deconv=False)
    x_a = jax.random.normal(k_xa, (2, 2, 8, 41), jnp.float32)
    p_a = init_en_unet_params(k_pa, cfg_a)
    run_a = jax.jit(lambda x, p: en_unet_forward(x, p, cfg_a, use_pallas=True))
    ref_a = jax.jit(lambda x, p: en_unet_forward(x, p, cfg_a, use_pallas=False))
    out_a = jax.block_until_ready(run_a(x_a, p_a))
    exp_a = jax.block_until_ready(ref_a(x_a, p_a))
    assert out_a.shape == exp_a.shape == (2, 4, 8, 19)
    assert bool(jnp.allclose(out_a, exp_a, rtol=1e-3, atol=1e-3)), "En_unet (BN/conv) mismatch"

    # 2) Full En_unet_module: transposed-conv in_conv, IN norm, 'add' skips
    cfg_b = dict(cin=3, cout=4, k1=(2, 5), k2=(1, 3), intra_connect="add",
                 norm_type="IN", scale=2, is_deconv=True)
    x_b = jax.random.normal(k_xb, (2, 3, 8, 10), jnp.float32)
    p_b = init_en_unet_params(k_pb, cfg_b)
    run_b = jax.jit(lambda x, p: en_unet_forward(x, p, cfg_b, use_pallas=True))
    ref_b = jax.jit(lambda x, p: en_unet_forward(x, p, cfg_b, use_pallas=False))
    out_b = jax.block_until_ready(run_b(x_b, p_b))
    exp_b = jax.block_until_ready(ref_b(x_b, p_b))
    assert out_b.shape == exp_b.shape == (2, 4, 8, 23)
    assert bool(jnp.allclose(out_b, exp_b, rtol=1e-3, atol=1e-3)), "En_unet (IN/deconv) mismatch"

    # 3) Standalone NormSwitch kernels (1D, single-block fused path) + chunked cLN
    Cn, Tn = 8, 1000
    x1 = jax.random.normal(k_x1, (2, Cn, Tn), jnp.float32)
    g1 = 1.0 + 0.1 * jax.random.normal(k_g1, (Cn,), jnp.float32)
    b1 = 0.1 * jax.random.normal(k_g2, (Cn,), jnp.float32)
    y_bn = jax.block_until_ready(norm_switch_forward(x1, "BN", "1D", g1, b1))
    assert bool(jnp.allclose(y_bn, _ref_bn1d(x1, g1, b1), rtol=1e-4, atol=1e-4)), "BN mismatch"
    y_in = jax.block_until_ready(norm_switch_forward(x1, "IN", "1D", g1, b1))
    assert bool(jnp.allclose(y_in, _ref_in1d(x1, g1, b1), rtol=1e-4, atol=1e-4)), "IN mismatch"

    Cc, Tc = 6, 300                       # 2 chunks of 256 -> exercises the cLN carry
    xc = jax.random.normal(k_xc, (2, Cc, Tc), jnp.float32)
    gc = 1.0 + 0.1 * jax.random.normal(k_g3, (Cc,), jnp.float32)
    bc = 0.1 * jax.random.normal(k_g4, (Cc,), jnp.float32)
    y_cln = jax.block_until_ready(norm_switch_forward(xc, "cLN", "1D", gc, bc))
    assert bool(jnp.allclose(y_cln, _ref_cln1d(xc, gc, bc), rtol=1e-4, atol=1e-4)), "cLN mismatch"

    # 4) Tiled fallback path (forced with single_block_limit=0): multi-chunk
    #    GLU+stats accumulation and the parallel affine+PReLU pass.
    Bt, Ct, Slong = 2, 4, 20000
    y_t = jax.random.normal(k_yt, (Bt, 2 * Ct, Slong), jnp.float32)
    g_t = 1.0 + 0.1 * jax.random.normal(k_g1, (Ct,), jnp.float32)
    b_t = 0.1 * jax.random.normal(k_g2, (Ct,), jnp.float32)
    a_t = jnp.full((Ct,), 0.25, jnp.float32)
    out_t = jax.block_until_ready(
        _norm_prelu_pallas(y_t, "BN", g_t, b_t, a_t, gated=True, single_block_limit=0))
    exp_t = _ref_gated_norm_prelu_3d(y_t, "BN", g_t, b_t, a_t, gated=True)
    assert bool(jnp.allclose(out_t, exp_t, rtol=1e-3, atol=1e-3)), "tiled gated BN mismatch"

    x_t = jax.random.normal(k_xt, (Bt, Ct, Slong), jnp.float32)
    out_t2 = jax.block_until_ready(
        _norm_prelu_pallas(x_t, "IN", g_t, b_t, a_t, gated=False, single_block_limit=0))
    exp_t2 = _ref_gated_norm_prelu_3d(x_t, "IN", g_t, b_t, a_t, gated=False)
    assert bool(jnp.allclose(out_t2, exp_t2, rtol=1e-3, atol=1e-3)), "tiled IN mismatch"

    print("KERNEL_OK")
</pallas_src>

<mosaic_0001>
module attributes {stable_mosaic.version = 11 : i64} {
  func.func @_fused_gate_norm_prelu_kernel(%arg0: memref<2x8x152xf32, #tpu.memory_space<vmem>>, %arg1: memref<1x4x1xf32, #tpu.memory_space<vmem>>, %arg2: memref<1x4x1xf32, #tpu.memory_space<vmem>>, %arg3: memref<1x4x1xf32, #tpu.memory_space<vmem>>, %arg4: memref<2x4x152xf32, #tpu.memory_space<vmem>>) attributes {dimension_semantics = [], scalar_prefetch = 0 : i64, scratch_operands = 0 : i64, tpu.core_type = #tpu.core_type<tc>} {
    %c0 = arith.constant 0 : index
    %c0_0 = arith.constant 0 : index
    %c0_1 = arith.constant 0 : index
    %0 = vector.load %arg0[%c0, %c0_0, %c0_1] : memref<2x8x152xf32, #tpu.memory_space<vmem>>, vector<2x4x152xf32>
    %c0_2 = arith.constant 0 : index
    %c4 = arith.constant 4 : index
    %c0_3 = arith.constant 0 : index
    %1 = vector.load %arg0[%c0_2, %c4, %c0_3] : memref<2x8x152xf32, #tpu.memory_space<vmem>>, vector<2x4x152xf32>
    %cst = arith.constant 0.000000e+00 : f32
    %2 = vector.broadcast %cst : f32 to vector<2x4x152xf32>
    %3 = arith.subf %2, %1 : vector<2x4x152xf32>
    %4 = math.exp %3 : vector<2x4x152xf32>
    %cst_4 = arith.constant 1.000000e+00 : f32
    %5 = vector.broadcast %cst_4 : f32 to vector<2x4x152xf32>
    %6 = arith.addf %5, %4 : vector<2x4x152xf32>
    %cst_5 = arith.constant 1.000000e+00 : f32
    %7 = vector.broadcast %cst_5 : f32 to vector<2x4x152xf32>
    %8 = arith.divf %7, %6 : vector<2x4x152xf32>
    %9 = arith.mulf %0, %8 : vector<2x4x152xf32>
    %cst_6 = arith.constant dense<0.000000e+00> : vector<2x4xf32>
    %10 = vector.multi_reduction <add>, %9, %cst_6 [2] : vector<2x4x152xf32> to vector<2x4xf32>
    %11 = vector.shape_cast %10 : vector<2x4xf32> to vector<2x4x1xf32>
    %cst_7 = arith.constant dense<0.000000e+00> : vector<4x1xf32>
    %12 = vector.multi_reduction <add>, %11, %cst_7 [0] : vector<2x4x1xf32> to vector<4x1xf32>
    %13 = vector.shape_cast %12 : vector<4x1xf32> to vector<1x4x1xf32>
    %cst_8 = arith.constant 0.00328947371 : f32
    %14 = vector.broadcast %cst_8 : f32 to vector<1x4x1xf32>
    %15 = arith.mulf %13, %14 : vector<1x4x1xf32>
    %16 = vector.broadcast %15 : vector<1x4x1xf32> to vector<2x4x152xf32>
    %17 = arith.subf %9, %16 : vector<2x4x152xf32>
    %18 = arith.mulf %17, %17 : vector<2x4x152xf32>
    %cst_9 = arith.constant dense<0.000000e+00> : vector<2x4xf32>
    %19 = vector.multi_reduction <add>, %18, %cst_9 [2] : vector<2x4x152xf32> to vector<2x4xf32>
    %20 = vector.shape_cast %19 : vector<2x4xf32> to vector<2x4x1xf32>
    %cst_10 = arith.constant dense<0.000000e+00> : vector<4x1xf32>
    %21 = vector.multi_reduction <add>, %20, %cst_10 [0] : vector<2x4x1xf32> to vector<4x1xf32>
    %22 = vector.shape_cast %21 : vector<4x1xf32> to vector<1x4x1xf32>
    %cst_11 = arith.constant 0.00328947371 : f32
    %23 = vector.broadcast %cst_11 : f32 to vector<1x4x1xf32>
    %24 = arith.mulf %22, %23 : vector<1x4x1xf32>
    %c0_12 = arith.constant 0 : index
    %c0_13 = arith.constant 0 : index
    %c0_14 = arith.constant 0 : index
    %25 = vector.load %arg1[%c0_12, %c0_13, %c0_14] : memref<1x4x1xf32, #tpu.memory_space<vmem>>, vector<1x4x1xf32>
    %cst_15 = arith.constant 9.99999974E-6 : f32
    %26 = vector.broadcast %cst_15 : f32 to vector<1x4x1xf32>
    %27 = arith.addf %24, %26 : vector<1x4x1xf32>
    %28 = math.rsqrt %27 : vector<1x4x1xf32>
    %29 = arith.mulf %25, %28 : vector<1x4x1xf32>
    %c0_16 = arith.constant 0 : index
    %c0_17 = arith.constant 0 : index
    %c0_18 = arith.constant 0 : index
    %30 = vector.load %arg2[%c0_16, %c0_17, %c0_18] : memref<1x4x1xf32, #tpu.memory_space<vmem>>, vector<1x4x1xf32>
    %31 = arith.mulf %15, %29 : vector<1x4x1xf32>
    %32 = arith.subf %30, %31 : vector<1x4x1xf32>
    %33 = vector.broadcast %29 : vector<1x4x1xf32> to vector<2x4x152xf32>
    %34 = arith.mulf %9, %33 : vector<2x4x152xf32>
    %35 = vector.broadcast %32 : vector<1x4x1xf32> to vector<2x4x152xf32>
    %36 = arith.addf %34, %35 : vector<2x4x152xf32>
    %cst_19 = arith.constant 0.000000e+00 : f32
    %37 = vector.broadcast %cst_19 : f32 to vector<2x4x152xf32>
    %38 = arith.cmpf oge, %36, %37 : vector<2x4x152xf32>
    %c0_20 = arith.constant 0 : index
    %c0_21 = arith.constant 0 : index
    %c0_22 = arith.constant 0 : index
    %39 = vector.load %arg3[%c0_20, %c0_21, %c0_22] : memref<1x4x1xf32, #tpu.memory_space<vmem>>, vector<1x4x1xf32>
    %40 = vector.broadcast %39 : vector<1x4x1xf32> to vector<2x4x152xf32>
    %41 = arith.mulf %40, %36 : vector<2x4x152xf32>
    %42 = arith.select %38, %36, %41 : vector<2x4x152xi1>, vector<2x4x152xf32>
    %c0_23 = arith.constant 0 : index
    %c0_24 = arith.constant 0 : index
    %c0_25 = arith.constant 0 : index
    %43 = vector.load %arg4[%c0_23, %c0_24, %c0_25] : memref<2x4x152xf32, #tpu.memory_space<vmem>>, vector<2x4x152xf32>
    tpu.vector_store %arg4[%c0_23, %c0_24, %c0_25], %42 {strides = array<i32>} : memref<2x4x152xf32, #tpu.memory_space<vmem>>, vector<2x4x152xf32>,
    return
  }
}

module attributes {stable_mosaic.version = 11 : i64} {
  func.func @_fused_gate_norm_prelu_kernel(%arg0: memref<2x4x72xf32, #tpu.memory_space<vmem>>, %arg1: memref<1x4x1xf32, #tpu.memory_space<vmem>>, %arg2: memref<1x4x1xf32, #tpu.memory_space<vmem>>, %arg3: memref<1x4x1xf32, #tpu.memory_space<vmem>>, %arg4: memref<2x4x72xf32, #tpu.memory_space<vmem>>) attributes {dimension_semantics = [], scalar_prefetch = 0 : i64, scratch_operands = 0 : i64, tpu.core_type = #tpu.core_type<tc>} {
    %c0 = arith.constant 0 : index
    %c0_0 = arith.constant 0 : index
    %c0_1 = arith.constant 0 : index
    %0 = vector.load %arg0[%c0, %c0_0, %c0_1] : memref<2x4x72xf32, #tpu.memory_space<vmem>>, vector<2x4x72xf32>
    %cst = arith.constant dense<0.000000e+00> : vector<2x4xf32>
    %1 = vector.multi_reduction <add>, %0, %cst [2] : vector<2x4x72xf32> to vector<2x4xf32>
    %2 = vector.shape_cast %1 : vector<2x4xf32> to vector<2x4x1xf32>
    %cst_2 = arith.constant dense<0.000000e+00> : vector<4x1xf32>
    %3 = vector.multi_reduction <add>, %2, %cst_2 [0] : vector<2x4x1xf32> to vector<4x1xf32>
    %4 = vector.shape_cast %3 : vector<4x1xf32> to vector<1x4x1xf32>
    %cst_3 = arith.constant 0.0069444445 : f32
    %5 = vector.broadcast %cst_3 : f32 to vector<1x4x1xf32>
    %6 = arith.mulf %4, %5 : vector<1x4x1xf32>
    %7 = vector.broadcast %6 : vector<1x4x1xf32> to vector<2x4x72xf32>
    %8 = arith.subf %0, %7 : vector<2x4x72xf32>
    %9 = arith.mulf %8, %8 : vector<2x4x72xf32>
    %cst_4 = arith.constant dense<0.000000e+00> : vector<2x4xf32>
    %10 = vector.multi_reduction <add>, %9, %cst_4 [2] : vector<2x4x72xf32> to vector<2x4xf32>
    %11 = vector.shape_cast %10 : vector<2x4xf32> to vector<2x4x1xf32>
    %cst_5 = arith.constant dense<0.000000e+00> : vector<4x1xf32>
    %12 = vector.multi_reduction <add>, %11, %cst_5 [0] : vector<2x4x1xf32> to vector<4x1xf32>
    %13 = vector.shape_cast %12 : vector<4x1xf32> to vector<1x4x1xf32>
    %cst_6 = arith.constant 0.0069444445 : f32
    %14 = vector.broadcast %cst_6 : f32 to vector<1x4x1xf32>
    %15 = arith.mulf %13, %14 : vector<1x4x1xf32>
    %c0_7 = arith.constant 0 : index
    %c0_8 = arith.constant 0 : index
    %c0_9 = arith.constant 0 : index
    %16 = vector.load %arg1[%c0_7, %c0_8, %c0_9] : memref<1x4x1xf32, #tpu.memory_space<vmem>>, vector<1x4x1xf32>
    %cst_10 = arith.constant 9.99999974E-6 : f32
    %17 = vector.broadcast %cst_10 : f32 to vector<1x4x1xf32>
    %18 = arith.addf %15, %17 : vector<1x4x1xf32>
    %19 = math.rsqrt %18 : vector<1x4x1xf32>
    %20 = arith.mulf %16, %19 : vector<1x4x1xf32>
    %c0_11 = arith.constant 0 : index
    %c0_12 = arith.constant 0 : index
    %c0_13 = arith.constant 0 : index
    %21 = vector.load %arg2[%c0_11, %c0_12, %c0_13] : memref<1x4x1xf32, #tpu.memory_space<vmem>>, vector<1x4x1xf32>
    %22 = arith.mulf %6, %20 : vector<1x4x1xf32>
    %23 = arith.subf %21, %22 : vector<1x4x1xf32>
    %24 = vector.broadcast %20 : vector<1x4x1xf32> to vector<2x4x72xf32>
    %25 = arith.mulf %0, %24 : vector<2x4x72xf32>
    %26 = vector.broadcast %23 : vector<1x4x1xf32> to vector<2x4x72xf32>
    %27 = arith.addf %25, %26 : vector<2x4x72xf32>
    %cst_14 = arith.constant 0.000000e+00 : f32
    %28 = vector.broadcast %cst_14 : f32 to vector<2x4x72xf32>
    %29 = arith.cmpf oge, %27, %28 : vector<2x4x72xf32>
    %c0_15 = arith.constant 0 : index
    %c0_16 = arith.constant 0 : index
    %c0_17 = arith.constant 0 : index
    %30 = vector.load %arg3[%c0_15, %c0_16, %c0_17] : memref<1x4x1xf32, #tpu.memory_space<vmem>>, vector<1x4x1xf32>
    %31 = vector.broadcast %30 : vector<1x4x1xf32> to vector<2x4x72xf32>
    %32 = arith.mulf %31, %27 : vector<2x4x72xf32>
    %33 = arith.select %29, %27, %32 : vector<2x4x72xi1>, vector<2x4x72xf32>
    %c0_18 = arith.constant 0 : index
    %c0_19 = arith.constant 0 : index
    %c0_20 = arith.constant 0 : index
    %34 = vector.load %arg4[%c0_18, %c0_19, %c0_20] : memref<2x4x72xf32, #tpu.memory_space<vmem>>, vector<2x4x72xf32>
    tpu.vector_store %arg4[%c0_18, %c0_19, %c0_20], %33 {strides = array<i32>} : memref<2x4x72xf32, #tpu.memory_space<vmem>>, vector<2x4x72xf32>,
    return
  }
}

module attributes {stable_mosaic.version = 11 : i64} {
  func.func @_fused_gate_norm_prelu_kernel(%arg0: memref<2x4x32xf32, #tpu.memory_space<vmem>>, %arg1: memref<1x4x1xf32, #tpu.memory_space<vmem>>, %arg2: memref<1x4x1xf32, #tpu.memory_space<vmem>>, %arg3: memref<1x4x1xf32, #tpu.memory_space<vmem>>, %arg4: memref<2x4x32xf32, #tpu.memory_space<vmem>>) attributes {dimension_semantics = [], scalar_prefetch = 0 : i64, scratch_operands = 0 : i64, tpu.core_type = #tpu.core_type<tc>} {
    %c0 = arith.constant 0 : index
    %c0_0 = arith.constant 0 : index
    %c0_1 = arith.constant 0 : index
    %0 = vector.load %arg0[%c0, %c0_0, %c0_1] : memref<2x4x32xf32, #tpu.memory_space<vmem>>, vector<2x4x32xf32>
    %cst = arith.constant dense<0.000000e+00> : vector<2x4xf32>
    %1 = vector.multi_reduction <add>, %0, %cst [2] : vector<2x4x32xf32> to vector<2x4xf32>
    %2 = vector.shape_cast %1 : vector<2x4xf32> to vector<2x4x1xf32>
    %cst_2 = arith.constant dense<0.000000e+00> : vector<4x1xf32>
    %3 = vector.multi_reduction <add>, %2, %cst_2 [0] : vector<2x4x1xf32> to vector<4x1xf32>
    %4 = vector.shape_cast %3 : vector<4x1xf32> to vector<1x4x1xf32>
    %cst_3 = arith.constant 1.562500e-02 : f32
    %5 = vector.broadcast %cst_3 : f32 to vector<1x4x1xf32>
    %6 = arith.mulf %4, %5 : vector<1x4x1xf32>
    %7 = vector.broadcast %6 : vector<1x4x1xf32> to vector<2x4x32xf32>
    %8 = arith.subf %0, %7 : vector<2x4x32xf32>
    %9 = arith.mulf %8, %8 : vector<2x4x32xf32>
    %cst_4 = arith.constant dense<0.000000e+00> : vector<2x4xf32>
    %10 = vector.multi_reduction <add>, %9, %cst_4 [2] : vector<2x4x32xf32> to vector<2x4xf32>
    %11 = vector.shape_cast %10 : vector<2x4xf32> to vector<2x4x1xf32>
    %cst_5 = arith.constant dense<0.000000e+00> : vector<4x1xf32>
    %12 = vector.multi_reduction <add>, %11, %cst_5 [0] : vector<2x4x1xf32> to vector<4x1xf32>
    %13 = vector.shape_cast %12 : vector<4x1xf32> to vector<1x4x1xf32>
    %cst_6 = arith.constant 1.562500e-02 : f32
    %14 = vector.broadcast %cst_6 : f32 to vector<1x4x1xf32>
    %15 = arith.mulf %13, %14 : vector<1x4x1xf32>
    %c0_7 = arith.constant 0 : index
    %c0_8 = arith.constant 0 : index
    %c0_9 = arith.constant 0 : index
    %16 = vector.load %arg1[%c0_7, %c0_8, %c0_9] : memref<1x4x1xf32, #tpu.memory_space<vmem>>, vector<1x4x1xf32>
    %cst_10 = arith.constant 9.99999974E-6 : f32
    %17 = vector.broadcast %cst_10 : f32 to vector<1x4x1xf32>
    %18 = arith.addf %15, %17 : vector<1x4x1xf32>
    %19 = math.rsqrt %18 : vector<1x4x1xf32>
    %20 = arith.mulf %16, %19 : vector<1x4x1xf32>
    %c0_11 = arith.constant 0 : index
    %c0_12 = arith.constant 0 : index
    %c0_13 = arith.constant 0 : index
    %21 = vector.load %arg2[%c0_11, %c0_12, %c0_13] : memref<1x4x1xf32, #tpu.memory_space<vmem>>, vector<1x4x1xf32>
    %22 = arith.mulf %6, %20 : vector<1x4x1xf32>
    %23 = arith.subf %21, %22 : vector<1x4x1xf32>
    %24 = vector.broadcast %20 : vector<1x4x1xf32> to vector<2x4x32xf32>
    %25 = arith.mulf %0, %24 : vector<2x4x32xf32>
    %26 = vector.broadcast %23 : vector<1x4x1xf32> to vector<2x4x32xf32>
    %27 = arith.addf %25, %26 : vector<2x4x32xf32>
    %cst_14 = arith.constant 0.000000e+00 : f32
    %28 = vector.broadcast %cst_14 : f32 to vector<2x4x32xf32>
    %29 = arith.cmpf oge, %27, %28 : vector<2x4x32xf32>
    %c0_15 = arith.constant 0 : index
    %c0_16 = arith.constant 0 : index
    %c0_17 = arith.constant 0 : index
    %30 = vector.load %arg3[%c0_15, %c0_16, %c0_17] : memref<1x4x1xf32, #tpu.memory_space<vmem>>, vector<1x4x1xf32>
    %31 = vector.broadcast %30 : vector<1x4x1xf32> to vector<2x4x32xf32>
    %32 = arith.mulf %31, %27 : vector<2x4x32xf32>
    %33 = arith.select %29, %27, %32 : vector<2x4x32xi1>, vector<2x4x32xf32>
    %c0_18 = arith.constant 0 : index
    %c0_19 = arith.constant 0 : index
    %c0_20 = arith.constant 0 : index
    %34 = vector.load %arg4[%c0_18, %c0_19, %c0_20] : memref<2x4x32xf32, #tpu.memory_space<vmem>>, vector<2x4x32xf32>
    tpu.vector_store %arg4[%c0_18, %c0_19, %c0_20], %33 {strides = array<i32>} : memref<2x4x32xf32, #tpu.memory_space<vmem>>, vector<2x4x32xf32>,
    return
  }
}

module attributes {stable_mosaic.version = 11 : i64} {
  func.func @_fused_gate_norm_prelu_kernel(%arg0: memref<2x4x152xf32, #tpu.memory_space<vmem>>, %arg1: memref<1x4x1xf32, #tpu.memory_space<vmem>>, %arg2: memref<1x4x1xf32, #tpu.memory_space<vmem>>, %arg3: memref<1x4x1xf32, #tpu.memory_space<vmem>>, %arg4: memref<2x4x152xf32, #tpu.memory_space<vmem>>) attributes {dimension_semantics = [], scalar_prefetch = 0 : i64, scratch_operands = 0 : i64, tpu.core_type = #tpu.core_type<tc>} {
    %c0 = arith.constant 0 : index
    %c0_0 = arith.constant 0 : index
    %c0_1 = arith.constant 0 : index
    %0 = vector.load %arg0[%c0, %c0_0, %c0_1] : memref<2x4x152xf32, #tpu.memory_space<vmem>>, vector<2x4x152xf32>
    %cst = arith.constant dense<0.000000e+00> : vector<2x4xf32>
    %1 = vector.multi_reduction <add>, %0, %cst [2] : vector<2x4x152xf32> to vector<2x4xf32>
    %2 = vector.shape_cast %1 : vector<2x4xf32> to vector<2x4x1xf32>
    %cst_2 = arith.constant dense<0.000000e+00> : vector<4x1xf32>
    %3 = vector.multi_reduction <add>, %2, %cst_2 [0] : vector<2x4x1xf32> to vector<4x1xf32>
    %4 = vector.shape_cast %3 : vector<4x1xf32> to vector<1x4x1xf32>
    %cst_3 = arith.constant 0.00328947371 : f32
    %5 = vector.broadcast %cst_3 : f32 to vector<1x4x1xf32>
    %6 = arith.mulf %4, %5 : vector<1x4x1xf32>
    %7 = vector.broadcast %6 : vector<1x4x1xf32> to vector<2x4x152xf32>
    %8 = arith.subf %0, %7 : vector<2x4x152xf32>
    %9 = arith.mulf %8, %8 : vector<2x4x152xf32>
    %cst_4 = arith.constant dense<0.000000e+00> : vector<2x4xf32>
    %10 = vector.multi_reduction <add>, %9, %cst_4 [2] : vector<2x4x152xf32> to vector<2x4xf32>
    %11 = vector.shape_cast %10 : vector<2x4xf32> to vector<2x4x1xf32>
    %cst_5 = arith.constant dense<0.000000e+00> : vector<4x1xf32>
    %12 = vector.multi_reduction <add>, %11, %cst_5 [0] : vector<2x4x1xf32> to vector<4x1xf32>
    %13 = vector.shape_cast %12 : vector<4x1xf32> to vector<1x4x1xf32>
    %cst_6 = arith.constant 0.00328947371 : f32
    %14 = vector.broadcast %cst_6 : f32 to vector<1x4x1xf32>
    %15 = arith.mulf %13, %14 : vector<1x4x1xf32>
    %c0_7 = arith.constant 0 : index
    %c0_8 = arith.constant 0 : index
    %c0_9 = arith.constant 0 : index
    %16 = vector.load %arg1[%c0_7, %c0_8, %c0_9] : memref<1x4x1xf32, #tpu.memory_space<vmem>>, vector<1x4x1xf32>
    %cst_10 = arith.constant 9.99999974E-6 : f32
    %17 = vector.broadcast %cst_10 : f32 to vector<1x4x1xf32>
    %18 = arith.addf %15, %17 : vector<1x4x1xf32>
    %19 = math.rsqrt %18 : vector<1x4x1xf32>
    %20 = arith.mulf %16, %19 : vector<1x4x1xf32>
    %c0_11 = arith.constant 0 : index
    %c0_12 = arith.constant 0 : index
    %c0_13 = arith.constant 0 : index
    %21 = vector.load %arg2[%c0_11, %c0_12, %c0_13] : memref<1x4x1xf32, #tpu.memory_space<vmem>>, vector<1x4x1xf32>
    %22 = arith.mulf %6, %20 : vector<1x4x1xf32>
    %23 = arith.subf %21, %22 : vector<1x4x1xf32>
    %24 = vector.broadcast %20 : vector<1x4x1xf32> to vector<2x4x152xf32>
    %25 = arith.mulf %0, %24 : vector<2x4x152xf32>
    %26 = vector.broadcast %23 : vector<1x4x1xf32> to vector<2x4x152xf32>
    %27 = arith.addf %25, %26 : vector<2x4x152xf32>
    %cst_14 = arith.constant 0.000000e+00 : f32
    %28 = vector.broadcast %cst_14 : f32 to vector<2x4x152xf32>
    %29 = arith.cmpf oge, %27, %28 : vector<2x4x152xf32>
    %c0_15 = arith.constant 0 : index
    %c0_16 = arith.constant 0 : index
    %c0_17 = arith.constant 0 : index
    %30 = vector.load %arg3[%c0_15, %c0_16, %c0_17] : memref<1x4x1xf32, #tpu.memory_space<vmem>>, vector<1x4x1xf32>
    %31 = vector.broadcast %30 : vector<1x4x1xf32> to vector<2x4x152xf32>
    %32 = arith.mulf %31, %27 : vector<2x4x152xf32>
    %33 = arith.select %29, %27, %32 : vector<2x4x152xi1>, vector<2x4x152xf32>
    %c0_18 = arith.constant 0 : index
    %c0_19 = arith.constant 0 : index
    %c0_20 = arith.constant 0 : index
    %34 = vector.load %arg4[%c0_18, %c0_19, %c0_20] : memref<2x4x152xf32, #tpu.memory_space<vmem>>, vector<2x4x152xf32>
    tpu.vector_store %arg4[%c0_18, %c0_19, %c0_20], %33 {strides = array<i32>} : memref<2x4x152xf32, #tpu.memory_space<vmem>>, vector<2x4x152xf32>,
    return
  }
}

</mosaic_0001>

<llo_original>
// kernel: _lambda_.5
$region0: #{_lambda_.5}
  #allocation0 [shape = 'u32[]', space=smem, size = 0x4, offset = 0x4, fixed_abs, tag = 'smem constant byte address 0x4 - core index']
  #allocation1 [shape = 'u32[144,128]{1,0:T(1,128)}', space=vmem, size = 0x12000, scoped, tag = 'internal scratch']
  %s0 = inlined_call_operand.vmem [shape: f32[2,8,152], index: 0, kind: input, shape index: {}]
  %s1 = inlined_call_operand.vmem [shape: f32[1,4,1], index: 1, kind: input, shape index: {}]
  %s2 = inlined_call_operand.vmem [shape: f32[1,4,1], index: 2, kind: input, shape index: {}]
  %s3 = inlined_call_operand.vmem [shape: f32[1,4,1], index: 3, kind: input, shape index: {}]
  %s4 = inlined_call_operand.vmem [shape: f32[2,4,152], index: 4, kind: output, shape index: {}]
  %s5 = sld [smem:[#allocation0]]
  $region26: #{_lambda_.5} parent=0
    _
  %s7 = ssub.s32 1, %s5
  %s8 = scalar_select 0, %s7, %s5
  // Predicated region
  $region2: #{_lambda_.5} parent=0 // pred_check
    _
  $region3: #{_lambda_.5} parent=0 // pred_check_branch
    %10 = sbr.rel (0) target = $region5
  $region4: #{_lambda_.5} parent=0 // pred_region
    _
  $region5: #{_lambda_.5} parent=0 // pred_fallthru
    _
  // Predicated region
  $region6: #{_lambda_.5} parent=0 // pred_check
    _
  $region7: #{_lambda_.5} parent=0 // pred_check_branch
    %12 = sbr.rel (0) target = $region9
  $region8: #{_lambda_.5} parent=0 // pred_region
    _
  $region9: #{_lambda_.5} parent=0 // pred_fallthru
    _
  // Predicated region
  $region10: #{_lambda_.5} parent=0 // pred_check
    _
  $region11: #{_lambda_.5} parent=0 // pred_check_branch
    %14 = sbr.rel (0) target = $region13
  $region12: #{_lambda_.5} parent=0 // pred_region
    _
  $region13: #{_lambda_.5} parent=0 // pred_fallthru
    _
  // Predicated region
  $region14: #{_lambda_.5} parent=0 // pred_check
    _
  $region15: #{_lambda_.5} parent=0 // pred_check_branch
    %16 = sbr.rel (0) target = $region17
  $region16: #{_lambda_.5} parent=0 // pred_region
    _
  $region17: #{_lambda_.5} parent=0 // pred_fallthru
    _
  %v17 = vld [vmem:[%s0] sm:$0xf]
  %v18 = vld [vmem:[%s0 + $0x8] sm:$0xf]
  %v19 = vld [vmem:[%s0 + $0x10] sm:$0xf]
  %v20 = vld [vmem:[%s0 + $0x18] sm:$0xf]
  %v21 = vld [vmem:[%s0] sm:$0xf0]
  %v22 = vld [vmem:[%s0 + $0x8] sm:$0xf0]
  %v23 = vld [vmem:[%s0 + $0x10] sm:$0xf0]
  %v24 = vld [vmem:[%s0 + $0x18] sm:$0xf0]
  %v25 = vsub.f32 0.0, %v21
  %v26 = vsub.f32 0.0, %v22
  %v27 = vsub.f32 0.0, %v23
  %v28 = vsub.f32 0.0, %v24
  %v29 = vmul.f32 %v25, 1.442695
  %v30 = vpow.pop %v29
  %v31 = vmul.f32 %v26, 1.442695
  %v32 = vpow.pop %v31
  %v33 = vmul.f32 %v27, 1.442695
  %v34 = vpow.pop %v33
  %v35 = vmul.f32 %v28, 1.442695
  %v36 = vpow.pop %v35
  %v37 = vadd.f32 %v30, 1.0
  %v38 = vadd.f32 %v32, 1.0
  %v39 = vadd.f32 %v34, 1.0
  %v40 = vadd.f32 %v36, 1.0
  %v41 = vrcp.pop %v37
  %v42 = vmul.f32 1.0, %v41
  %v43 = vrcp.pop %v38
  %v44 = vmul.f32 1.0, %v43
  %v45 = vrcp.pop %v39
  %v46 = vmul.f32 1.0, %v45
  %v47 = vrcp.pop %v40
  %v48 = vmul.f32 1.0, %v47
  %v53 = vrot.slane %v42, 4
  %v54 = vrot.slane %v44, 4
  %v55 = vrot.slane %v46, 4
  %v56 = vrot.slane %v48, 4
  %v61 = vmul.f32 %v17, %v53
  %v62 = vmul.f32 %v18, %v54
  %v63 = vmul.f32 %v19, %v55
  %v64 = vmul.f32 %v20, %v56
  %vm65 = vcmask 1043456
  %v66 = vsel %vm65, %v61, 0.0
  %vm67 = vcmask 191488
  %v68 = vsel %vm67, %v62, 0.0
  %v69 = vadd.f32 %v66, %v68
  %70 = vadd.xlane.f32.xlu0 %v69
  %v71 = vpop.xlane.xlu0 %70
  %v72 = vsel %vm65, %v63, 0.0
  %v73 = vsel %vm67, %v64, 0.0
  %v74 = vadd.f32 %v72, %v73
  %75 = vadd.xlane.f32.xlu0 %v74
  %v76 = vpop.xlane.xlu0 %75
  %v77 = vsel %vm65, %v71, 0.0
  %v78 = vsel %vm65, %v76, 0.0
  %v79 = vadd.f32 %v77, %v78
  %v80 = vmul.f32 %v79, 0.0032894737
  %v81 = vsub.f32 %v61, %v80
  %v82 = vsub.f32 %v62, %v80
  %v83 = vsub.f32 %v63, %v80
  %v84 = vsub.f32 %v64, %v80
  %v85 = vmul.f32 %v81, %v81
  %v86 = vmul.f32 %v82, %v82
  %v87 = vmul.f32 %v83, %v83
  %v88 = vmul.f32 %v84, %v84
  %v89 = vsel %vm65, %v85, 0.0
  %v90 = vsel %vm67, %v86, 0.0
  %v91 = vadd.f32 %v89, %v90
  %92 = vadd.xlane.f32.xlu0 %v91
  %v93 = vpop.xlane.xlu0 %92
  %v94 = vsel %vm65, %v87, 0.0
  %v95 = vsel %vm67, %v88, 0.0
  %v96 = vadd.f32 %v94, %v95
  %97 = vadd.xlane.f32.xlu0 %v96
  %v98 = vpop.xlane.xlu0 %97
  %v99 = vsel %vm65, %v93, 0.0
  %v100 = vsel %vm65, %v98, 0.0
  %v101 = vadd.f32 %v99, %v100
  %v102 = vmul.f32 %v101, 0.0032894737
  %v103 = vld [vmem:[%s1] sm:$0xf]
  %v104 = vadd.f32 %v102, 1e-05
  %v105 = vrsqrt.pop %v104
  %v106 = vmul.f32 %v103, %v105
  %v107 = vld [vmem:[%s2] sm:$0xf]
  %v108 = vmul.f32 %v80, %v106
  %v109 = vsub.f32 %v107, %v108
  %111 = vset.pattern.permute.xlu0 0
  %112 = vperm.xlu0 %111, %v106
  %v113 = vpop.permute.xlu0 %112
  %v115 = vmul.f32 %v61, %v113
  %v116 = vmul.f32 %v62, %v113
  %v117 = vmul.f32 %v63, %v113
  %v118 = vmul.f32 %v64, %v113
  %120 = vset.pattern.permute.xlu0 0
  %121 = vperm.xlu0 %120, %v109
  %v122 = vpop.permute.xlu0 %121
  %v124 = vadd.f32 %v115, %v122
  %v125 = vadd.f32 %v116, %v122
  %v126 = vadd.f32 %v117, %v122
  %v127 = vadd.f32 %v118, %v122
  %vm128 = vcmp.ge.f32.partialorder %v124, 0.0
  %vm129 = vcmp.ge.f32.partialorder %v125, 0.0
  %vm130 = vcmp.ge.f32.partialorder %v126, 0.0
  %vm131 = vcmp.ge.f32.partialorder %v127, 0.0
  %v132 = vld [vmem:[%s3] sm:$0xf]
  %134 = vset.pattern.permute.xlu0 0
  %135 = vperm.xlu0 %134, %v132
  %v136 = vpop.permute.xlu0 %135
  %v138 = vmul.f32 %v136, %v124
  %v139 = vmul.f32 %v136, %v125
  %v140 = vmul.f32 %v136, %v126
  %v141 = vmul.f32 %v136, %v127
  %v142 = vsel %vm128, %v124, %v138
  %v143 = vsel %vm129, %v125, %v139
  %v144 = vsel %vm130, %v126, %v140
  %v145 = vsel %vm131, %v127, %v141
  %v150 = vcombine.low %v142, %v143
  %v151 = vcombine.low %v144, %v145
  %vm154 = vcmask 195588
  %vm155 = vmor %vm154, %vm65
  %156 = vst.msk [vmem:[%s4] sm:$0xff] %vm155, %v150
  %157 = vst.msk [vmem:[%s4 + $0x8] sm:$0xff] %vm155, %v151
  // Predicated region
  $region18: #{_lambda_.5} parent=0 // pred_check
    _
  $region19: #{_lambda_.5} parent=0 // pred_check_branch
    %159 = sbr.rel (0) target = $region21
  $region20: #{_lambda_.5} parent=0 // pred_region
    _
  $region21: #{_lambda_.5} parent=0 // pred_fallthru
    _
  // Predicated region
  $region22: #{_lambda_.5} parent=0 // pred_check
    _
  $region23: #{_lambda_.5} parent=0 // pred_check_branch
    %161 = sbr.rel (0) target = $region25
  $region24: #{_lambda_.5} parent=0 // pred_region
    _
  $region25: #{_lambda_.5} parent=0 // pred_fallthru
    _

// kernel: _lambda_.6
$region0: #{_lambda_.6}
  #allocation0 [shape = 'u32[]', space=smem, size = 0x4, offset = 0x4, fixed_abs, tag = 'smem constant byte address 0x4 - core index']
  #allocation1 [shape = 'u32[144,128]{1,0:T(1,128)}', space=vmem, size = 0x12000, scoped, tag = 'internal scratch']
  %s0 = inlined_call_operand.vmem [shape: f32[2,4,72], index: 0, kind: input, shape index: {}]
  %s1 = inlined_call_operand.vmem [shape: f32[1,4,1], index: 1, kind: input, shape index: {}]
  %s2 = inlined_call_operand.vmem [shape: f32[1,4,1], index: 2, kind: input, shape index: {}]
  %s3 = inlined_call_operand.vmem [shape: f32[1,4,1], index: 3, kind: input, shape index: {}]
  %s4 = inlined_call_operand.vmem [shape: f32[2,4,72], index: 4, kind: output, shape index: {}]
  %s5 = sld [smem:[#allocation0]]
  $region26: #{_lambda_.6} parent=0
    _
  %s7 = ssub.s32 1, %s5
  %s8 = scalar_select 0, %s7, %s5
  // Predicated region
  $region2: #{_lambda_.6} parent=0 // pred_check
    _
  $region3: #{_lambda_.6} parent=0 // pred_check_branch
    %10 = sbr.rel (0) target = $region5
  $region4: #{_lambda_.6} parent=0 // pred_region
    _
  $region5: #{_lambda_.6} parent=0 // pred_fallthru
    _
  // Predicated region
  $region6: #{_lambda_.6} parent=0 // pred_check
    _
  $region7: #{_lambda_.6} parent=0 // pred_check_branch
    %12 = sbr.rel (0) target = $region9
  $region8: #{_lambda_.6} parent=0 // pred_region
    _
  $region9: #{_lambda_.6} parent=0 // pred_fallthru
    _
  // Predicated region
  $region10: #{_lambda_.6} parent=0 // pred_check
    _
  $region11: #{_lambda_.6} parent=0 // pred_check_branch
    %14 = sbr.rel (0) target = $region13
  $region12: #{_lambda_.6} parent=0 // pred_region
    _
  $region13: #{_lambda_.6} parent=0 // pred_fallthru
    _
  // Predicated region
  $region14: #{_lambda_.6} parent=0 // pred_check
    _
  $region15: #{_lambda_.6} parent=0 // pred_check_branch
    %16 = sbr.rel (0) target = $region17
  $region16: #{_lambda_.6} parent=0 // pred_region
    _
  $region17: #{_lambda_.6} parent=0 // pred_fallthru
    _
  %v17 = vld [vmem:[%s0] sm:$0xf]
  %v18 = vld [vmem:[%s0 + $0x4] sm:$0xf]
  %vm19 = vcmask 584704
  %v20 = vsel %vm19, %v17, 0.0
  %21 = vadd.xlane.f32.xlu0 %v20
  %v22 = vpop.xlane.xlu0 %21
  %v23 = vsel %vm19, %v18, 0.0
  %24 = vadd.xlane.f32.xlu0 %v23
  %v25 = vpop.xlane.xlu0 %24
  %vm26 = vcmask 1043456
  %v27 = vsel %vm26, %v22, 0.0
  %v28 = vsel %vm26, %v25, 0.0
  %v29 = vadd.f32 %v27, %v28
  %v30 = vmul.f32 %v29, 0.0069444445
  %v31 = vsub.f32 %v17, %v30
  %v32 = vsub.f32 %v18, %v30
  %v33 = vmul.f32 %v31, %v31
  %v34 = vmul.f32 %v32, %v32
  %v35 = vsel %vm19, %v33, 0.0
  %36 = vadd.xlane.f32.xlu0 %v35
  %v37 = vpop.xlane.xlu0 %36
  %v38 = vsel %vm19, %v34, 0.0
  %39 = vadd.xlane.f32.xlu0 %v38
  %v40 = vpop.xlane.xlu0 %39
  %v41 = vsel %vm26, %v37, 0.0
  %v42 = vsel %vm26, %v40, 0.0
  %v43 = vadd.f32 %v41, %v42
  %v44 = vmul.f32 %v43, 0.0069444445
  %v45 = vld [vmem:[%s1] sm:$0xf]
  %v46 = vadd.f32 %v44, 1e-05
  %v47 = vrsqrt.pop %v46
  %v48 = vmul.f32 %v45, %v47
  %v49 = vld [vmem:[%s2] sm:$0xf]
  %v50 = vmul.f32 %v30, %v48
  %v51 = vsub.f32 %v49, %v50
  %53 = vset.pattern.permute.xlu0 0
  %54 = vperm.xlu0 %53, %v48
  %v55 = vpop.permute.xlu0 %54
  %v57 = vmul.f32 %v17, %v55
  %v58 = vmul.f32 %v18, %v55
  %60 = vset.pattern.permute.xlu0 0
  %61 = vperm.xlu0 %60, %v51
  %v62 = vpop.permute.xlu0 %61
  %v64 = vadd.f32 %v57, %v62
  %v65 = vadd.f32 %v58, %v62
  %vm66 = vcmp.ge.f32.partialorder %v64, 0.0
  %vm67 = vcmp.ge.f32.partialorder %v65, 0.0
  %v68 = vld [vmem:[%s3] sm:$0xf]
  %70 = vset.pattern.permute.xlu0 0
  %71 = vperm.xlu0 %70, %v68
  %v72 = vpop.permute.xlu0 %71
  %v74 = vmul.f32 %v72, %v64
  %v75 = vmul.f32 %v72, %v65
  %v76 = vsel %vm66, %v64, %v74
  %v77 = vsel %vm67, %v65, %v75
  %78 = vst.msk [vmem:[%s4] sm:$0xf] %vm19, %v76
  %79 = vst.msk [vmem:[%s4 + $0x4] sm:$0xf] %vm19, %v77
  // Predicated region
  $region18: #{_lambda_.6} parent=0 // pred_check
    _
  $region19: #{_lambda_.6} parent=0 // pred_check_branch
    %81 = sbr.rel (0) target = $region21
  $region20: #{_lambda_.6} parent=0 // pred_region
    _
  $region21: #{_lambda_.6} parent=0 // pred_fallthru
    _
  // Predicated region
  $region22: #{_lambda_.6} parent=0 // pred_check
    _
  $region23: #{_lambda_.6} parent=0 // pred_check_branch
    %83 = sbr.rel (0) target = $region25
  $region24: #{_lambda_.6} parent=0 // pred_region
    _
  $region25: #{_lambda_.6} parent=0 // pred_fallthru
    _

// kernel: _lambda_.7
$region0: #{_lambda_.7}
  #allocation0 [shape = 'u32[]', space=smem, size = 0x4, offset = 0x4, fixed_abs, tag = 'smem constant byte address 0x4 - core index']
  #allocation1 [shape = 'u32[144,128]{1,0:T(1,128)}', space=vmem, size = 0x12000, scoped, tag = 'internal scratch']
  %s0 = inlined_call_operand.vmem [shape: f32[2,4,32], index: 0, kind: input, shape index: {}]
  %s1 = inlined_call_operand.vmem [shape: f32[1,4,1], index: 1, kind: input, shape index: {}]
  %s2 = inlined_call_operand.vmem [shape: f32[1,4,1], index: 2, kind: input, shape index: {}]
  %s3 = inlined_call_operand.vmem [shape: f32[1,4,1], index: 3, kind: input, shape index: {}]
  %s4 = inlined_call_operand.vmem [shape: f32[2,4,32], index: 4, kind: output, shape index: {}]
  %s5 = sld [smem:[#allocation0]]
  $region26: #{_lambda_.7} parent=0
    _
  %s7 = ssub.s32 1, %s5
  %s8 = scalar_select 0, %s7, %s5
  // Predicated region
  $region2: #{_lambda_.7} parent=0 // pred_check
    _
  $region3: #{_lambda_.7} parent=0 // pred_check_branch
    %10 = sbr.rel (0) target = $region5
  $region4: #{_lambda_.7} parent=0 // pred_region
    _
  $region5: #{_lambda_.7} parent=0 // pred_fallthru
    _
  // Predicated region
  $region6: #{_lambda_.7} parent=0 // pred_check
    _
  $region7: #{_lambda_.7} parent=0 // pred_check_branch
    %12 = sbr.rel (0) target = $region9
  $region8: #{_lambda_.7} parent=0 // pred_region
    _
  $region9: #{_lambda_.7} parent=0 // pred_fallthru
    _
  // Predicated region
  $region10: #{_lambda_.7} parent=0 // pred_check
    _
  $region11: #{_lambda_.7} parent=0 // pred_check_branch
    %14 = sbr.rel (0) target = $region13
  $region12: #{_lambda_.7} parent=0 // pred_region
    _
  $region13: #{_lambda_.7} parent=0 // pred_fallthru
    _
  // Predicated region
  $region14: #{_lambda_.7} parent=0 // pred_check
    _
  $region15: #{_lambda_.7} parent=0 // pred_check_branch
    %16 = sbr.rel (0) target = $region17
  $region16: #{_lambda_.7} parent=0 // pred_region
    _
  $region17: #{_lambda_.7} parent=0 // pred_fallthru
    _
  %v17 = vld [vmem:[%s0] sm:$0xf]
  %v18 = vld [vmem:[%s0 + $0x4] sm:$0xf]
  %vm19 = vcmask 257024
  %v20 = vsel %vm19, %v17, 0.0
  %21 = vadd.xlane.f32.xlu0 %v20
  %v22 = vpop.xlane.xlu0 %21
  %v23 = vsel %vm19, %v18, 0.0
  %24 = vadd.xlane.f32.xlu0 %v23
  %v25 = vpop.xlane.xlu0 %24
  %vm26 = vcmask 1043456
  %v27 = vsel %vm26, %v22, 0.0
  %v28 = vsel %vm26, %v25, 0.0
  %v29 = vadd.f32 %v27, %v28
  %v30 = vmul.f32 %v29, 0.015625
  %v31 = vsub.f32 %v17, %v30
  %v32 = vsub.f32 %v18, %v30
  %v33 = vmul.f32 %v31, %v31
  %v34 = vmul.f32 %v32, %v32
  %v35 = vsel %vm19, %v33, 0.0
  %36 = vadd.xlane.f32.xlu0 %v35
  %v37 = vpop.xlane.xlu0 %36
  %v38 = vsel %vm19, %v34, 0.0
  %39 = vadd.xlane.f32.xlu0 %v38
  %v40 = vpop.xlane.xlu0 %39
  %v41 = vsel %vm26, %v37, 0.0
  %v42 = vsel %vm26, %v40, 0.0
  %v43 = vadd.f32 %v41, %v42
  %v44 = vmul.f32 %v43, 0.015625
  %v45 = vld [vmem:[%s1] sm:$0xf]
  %v46 = vadd.f32 %v44, 1e-05
  %v47 = vrsqrt.pop %v46
  %v48 = vmul.f32 %v45, %v47
  %v49 = vld [vmem:[%s2] sm:$0xf]
  %v50 = vmul.f32 %v30, %v48
  %v51 = vsub.f32 %v49, %v50
  %53 = vset.pattern.permute.xlu0 0
  %54 = vperm.xlu0 %53, %v48
  %v55 = vpop.permute.xlu0 %54
  %v57 = vmul.f32 %v17, %v55
  %v58 = vmul.f32 %v18, %v55
  %60 = vset.pattern.permute.xlu0 0
  %61 = vperm.xlu0 %60, %v51
  %v62 = vpop.permute.xlu0 %61
  %v64 = vadd.f32 %v57, %v62
  %v65 = vadd.f32 %v58, %v62
  %vm66 = vcmp.ge.f32.partialorder %v64, 0.0
  %vm67 = vcmp.ge.f32.partialorder %v65, 0.0
  %v68 = vld [vmem:[%s3] sm:$0xf]
  %70 = vset.pattern.permute.xlu0 0
  %71 = vperm.xlu0 %70, %v68
  %v72 = vpop.permute.xlu0 %71
  %v74 = vmul.f32 %v72, %v64
  %v75 = vmul.f32 %v72, %v65
  %v76 = vsel %vm66, %v64, %v74
  %v77 = vsel %vm67, %v65, %v75
  %78 = vst.msk [vmem:[%s4] sm:$0xf] %vm19, %v76
  %79 = vst.msk [vmem:[%s4 + $0x4] sm:$0xf] %vm19, %v77
  // Predicated region
  $region18: #{_lambda_.7} parent=0 // pred_check
    _
  $region19: #{_lambda_.7} parent=0 // pred_check_branch
    %81 = sbr.rel (0) target = $region21
  $region20: #{_lambda_.7} parent=0 // pred_region
    _
  $region21: #{_lambda_.7} parent=0 // pred_fallthru
    _
  // Predicated region
  $region22: #{_lambda_.7} parent=0 // pred_check
    _
  $region23: #{_lambda_.7} parent=0 // pred_check_branch
    %83 = sbr.rel (0) target = $region25
  $region24: #{_lambda_.7} parent=0 // pred_region
    _
  $region25: #{_lambda_.7} parent=0 // pred_fallthru
    _

// kernel: _lambda_.9
$region0: #{_lambda_.9}
  #allocation0 [shape = 'u32[]', space=smem, size = 0x4, offset = 0x4, fixed_abs, tag = 'smem constant byte address 0x4 - core index']
  #allocation1 [shape = 'u32[144,128]{1,0:T(1,128)}', space=vmem, size = 0x12000, scoped, tag = 'internal scratch']
  %s0 = inlined_call_operand.vmem [shape: f32[2,4,152], index: 0, kind: input, shape index: {}]
  %s1 = inlined_call_operand.vmem [shape: f32[1,4,1], index: 1, kind: input, shape index: {}]
  %s2 = inlined_call_operand.vmem [shape: f32[1,4,1], index: 2, kind: input, shape index: {}]
  %s3 = inlined_call_operand.vmem [shape: f32[1,4,1], index: 3, kind: input, shape index: {}]
  %s4 = inlined_call_operand.vmem [shape: f32[2,4,152], index: 4, kind: output, shape index: {}]
  %s5 = sld [smem:[#allocation0]]
  $region26: #{_lambda_.9} parent=0
    _
  %s7 = ssub.s32 1, %s5
  %s8 = scalar_select 0, %s7, %s5
  // Predicated region
  $region2: #{_lambda_.9} parent=0 // pred_check
    _
  $region3: #{_lambda_.9} parent=0 // pred_check_branch
    %10 = sbr.rel (0) target = $region5
  $region4: #{_lambda_.9} parent=0 // pred_region
    _
  $region5: #{_lambda_.9} parent=0 // pred_fallthru
    _
  // Predicated region
  $region6: #{_lambda_.9} parent=0 // pred_check
    _
  $region7: #{_lambda_.9} parent=0 // pred_check_branch
    %12 = sbr.rel (0) target = $region9
  $region8: #{_lambda_.9} parent=0 // pred_region
    _
  $region9: #{_lambda_.9} parent=0 // pred_fallthru
    _
  // Predicated region
  $region10: #{_lambda_.9} parent=0 // pred_check
    _
  $region11: #{_lambda_.9} parent=0 // pred_check_branch
    %14 = sbr.rel (0) target = $region13
  $region12: #{_lambda_.9} parent=0 // pred_region
    _
  $region13: #{_lambda_.9} parent=0 // pred_fallthru
    _
  // Predicated region
  $region14: #{_lambda_.9} parent=0 // pred_check
    _
  $region15: #{_lambda_.9} parent=0 // pred_check_branch
    %16 = sbr.rel (0) target = $region17
  $region16: #{_lambda_.9} parent=0 // pred_region
    _
  $region17: #{_lambda_.9} parent=0 // pred_fallthru
    _
  %v17 = vld [vmem:[%s0] sm:$0xff]
  %v18 = vld [vmem:[%s0 + $0x8] sm:$0xff]
  %v21 = vcombine.high %v17, %v17
  %v22 = vcombine.high %v18, %v18
  %vm25 = vcmask 1043456
  %v26 = vsel %vm25, %v17, 0.0
  %vm27 = vcmask 191488
  %v28 = vsel %vm27, %v21, 0.0
  %v29 = vadd.f32 %v26, %v28
  %30 = vadd.xlane.f32.xlu0 %v29
  %v31 = vpop.xlane.xlu0 %30
  %v32 = vsel %vm25, %v18, 0.0
  %v33 = vsel %vm27, %v22, 0.0
  %v34 = vadd.f32 %v32, %v33
  %35 = vadd.xlane.f32.xlu0 %v34
  %v36 = vpop.xlane.xlu0 %35
  %v37 = vsel %vm25, %v31, 0.0
  %v38 = vsel %vm25, %v36, 0.0
  %v39 = vadd.f32 %v37, %v38
  %v40 = vmul.f32 %v39, 0.0032894737
  %v43 = vunpack.c.l.s4 839922192
  %v44 = vunpack.c.0.s8 %v43
  %v45 = vlaneseq
  %v46 = vshrl.u32 %v45, 7
  %v47 = vsub.s32 %v44, %v46
  %v48 = vrot.slane %v40, %v47
  %v50 = vsub.f32 %v17, %v48
  %v51 = vsub.f32 %v18, %v48
  %v52 = vmul.f32 %v50, %v50
  %v53 = vmul.f32 %v51, %v51
  %v56 = vcombine.high %v52, %v52
  %v57 = vcombine.high %v53, %v53
  %v60 = vsel %vm25, %v52, 0.0
  %v61 = vsel %vm27, %v56, 0.0
  %v62 = vadd.f32 %v60, %v61
  %63 = vadd.xlane.f32.xlu0 %v62
  %v64 = vpop.xlane.xlu0 %63
  %v65 = vsel %vm25, %v53, 0.0
  %v66 = vsel %vm27, %v57, 0.0
  %v67 = vadd.f32 %v65, %v66
  %68 = vadd.xlane.f32.xlu0 %v67
  %v69 = vpop.xlane.xlu0 %68
  %v70 = vsel %vm25, %v64, 0.0
  %v71 = vsel %vm25, %v69, 0.0
  %v72 = vadd.f32 %v70, %v71
  %v73 = vmul.f32 %v72, 0.0032894737
  %v74 = vld [vmem:[%s1] sm:$0xf]
  %v75 = vadd.f32 %v73, 1e-05
  %v76 = vrsqrt.pop %v75
  %v77 = vmul.f32 %v74, %v76
  %v78 = vld [vmem:[%s2] sm:$0xf]
  %v79 = vmul.f32 %v40, %v77
  %v80 = vsub.f32 %v78, %v79
  %82 = vset.pattern.permute.xlu0 0
  %83 = vperm.xlu0 %82, %v77
  %v84 = vpop.permute.xlu0 %83
  %v86 = vunpack.c.l.s4 839922192
  %v87 = vunpack.c.0.s8 %v86
  %v88 = vlaneseq
  %v89 = vshrl.u32 %v88, 7
  %v90 = vsub.s32 %v87, %v89
  %v91 = vrot.slane %v84, %v90
  %v93 = vmul.f32 %v17, %v91
  %v94 = vmul.f32 %v18, %v91
  %96 = vset.pattern.permute.xlu0 0
  %97 = vperm.xlu0 %96, %v80
  %v98 = vpop.permute.xlu0 %97
  %v100 = vunpack.c.l.s4 839922192
  %v101 = vunpack.c.0.s8 %v100
  %v102 = vlaneseq
  %v103 = vshrl.u32 %v102, 7
  %v104 = vsub.s32 %v101, %v103
  %v105 = vrot.slane %v98, %v104
  %v107 = vadd.f32 %v93, %v105
  %v108 = vadd.f32 %v94, %v105
  %vm109 = vcmp.ge.f32.partialorder %v107, 0.0
  %vm110 = vcmp.ge.f32.partialorder %v108, 0.0
  %v111 = vld [vmem:[%s3] sm:$0xf]
  %113 = vset.pattern.permute.xlu0 0
  %114 = vperm.xlu0 %113, %v111
  %v115 = vpop.permute.xlu0 %114
  %v119 = vcombine.high %v107, %v107
  %v120 = vcombine.high %v108, %v108
  %v123 = vmul.f32 %v115, %v107
  %v124 = vmul.f32 %v115, %v119
  %v125 = vmul.f32 %v115, %v108
  %v126 = vmul.f32 %v115, %v120
  %v131 = vcombine.low %v123, %v124
  %v132 = vcombine.low %v125, %v126
  %v135 = vsel %vm109, %v107, %v131
  %v136 = vsel %vm110, %v108, %v132
  %vm137 = vcmask 195588
  %vm138 = vmor %vm137, %vm25
  %139 = vst.msk [vmem:[%s4] sm:$0xff] %vm138, %v135
  %140 = vst.msk [vmem:[%s4 + $0x8] sm:$0xff] %vm138, %v136
  // Predicated region
  $region18: #{_lambda_.9} parent=0 // pred_check
    _
  $region19: #{_lambda_.9} parent=0 // pred_check_branch
    %142 = sbr.rel (0) target = $region21
  $region20: #{_lambda_.9} parent=0 // pred_region
    _
  $region21: #{_lambda_.9} parent=0 // pred_fallthru
    _
  // Predicated region
  $region22: #{_lambda_.9} parent=0 // pred_check
    _
  $region23: #{_lambda_.9} parent=0 // pred_check_branch
    %144 = sbr.rel (0) target = $region25
  $region24: #{_lambda_.9} parent=0 // pred_region
    _
  $region25: #{_lambda_.9} parent=0 // pred_fallthru
    _

</llo_original>
